<compile_context>
chip_gen: v5e
topology: v5e:2x2
jax: 0.10.0
libtpu: 0.0.40
codegen_flags: <defaults>
</compile_context>

<pallas_src>
import jax
import jax.numpy as jnp
from jax import lax
from jax.experimental import pallas as pl
from jax.experimental.pallas import tpu as pltpu


def gru_encoder_kernel(x_ref,     # (S, H)   pre-gathered embedding rows
                       h0_ref,    # (1, H)   initial hidden state
                       wih_ref,   # (H, 3H)  input->gates weights, pre-transposed
                       whh_ref,   # (H, 3H)  hidden->gates weights, pre-transposed
                       bih_ref,   # (1, 3H)  input biases
                       bhh_ref,   # (1, 3H)  hidden biases
                       out_ref,   # (S, H)   per-step hidden states (single writeback)
                       gi_scr):   # VMEM scratch (S, 3H): hoisted input projection
    S, H = x_ref.shape

    # Hoisted, non-recurrent input projection: one batched (S,H)x(H,3H) GEMM, off the
    # serial critical path.  PyTorch gate order along the 3H axis: [r | z | n].
    gi_scr[...] = (
        jnp.dot(x_ref[...], wih_ref[...], preferred_element_type=jnp.float32)
        + bih_ref[...]
    )

    # Operands of the recurrence, loaded once and kept in vregs.
    whh = whh_ref[...]
    bhh = bhh_ref[...]

    def step(t, h):
        gi_t = gi_scr[pl.ds(t, 1), :]                                     # (1, 3H)
        gh = jnp.dot(h, whh, preferred_element_type=jnp.float32) + bhh    # (1, 3H)

        # Fused r/z sigmoid over the contiguous first 2H lanes (one EUP call).
        rz = jax.nn.sigmoid(gi_t[:, :2 * H] + gh[:, :2 * H])
        r = rz[:, :H]
        z = rz[:, H:2 * H]
        n = jnp.tanh(gi_t[:, 2 * H:] + r * gh[:, 2 * H:])
        h_new = (1.0 - z) * n + z * h

        out_ref[pl.ds(t, 1), :] = h_new   # VMEM write; whole (S,H) block DMA'd once
        return h_new

    # Hidden state is the loop carry (vregs); loop fully unrolled for small static S.
    lax.fori_loop(0, S, step, h0_ref[...], unroll=True)


def prepare_encoder_params(params):
    """One-time parameter prep (hoisted out of the forward path)."""
    emb = params["embedding"]                          # (V, H)
    _, H = emb.shape
    return {
        "H": H,
        "embedding": emb,
        "wih_t": jnp.transpose(params["w_ih"]),        # (H, 3H)
        "whh_t": jnp.transpose(params["w_hh"]),        # (H, 3H)
        "bih": params["b_ih"].reshape(1, 3 * H),       # (1, 3H)
        "bhh": params["b_hh"].reshape(1, 3 * H),       # (1, 3H)
    }


def encoder_forward(tokens, hidden, prepped):
    """GRU encoder forward.

    tokens: scalar int (exact Encoder.forward semantics) or (S,) int32 sequence.
    hidden: (num_layers=1, batch=1, H) initial hidden state.
    Returns (output, h_n): output (S, 1, H), h_n (1, 1, H)  -- PyTorch shapes.
    """
    H = prepped["H"]
    tokens = jnp.asarray(tokens, jnp.int32).reshape(-1)
    S = int(tokens.shape[0])
    h0 = hidden.reshape(1, H).astype(jnp.float32)

    # Embedding lookup is a pure gather; doing it here (one jnp.take) feeds the batched
    # GI GEMM inside the kernel and removes all per-step 128-byte HBM DMAs.
    x = jnp.take(prepped["embedding"], tokens, axis=0).astype(jnp.float32)   # (S, H)

    out = pl.pallas_call(
        gru_encoder_kernel,
        out_shape=jax.ShapeDtypeStruct((S, H), jnp.float32),
        in_specs=[pl.BlockSpec(memory_space=pltpu.MemorySpace.VMEM)] * 6,
        out_specs=pl.BlockSpec(memory_space=pltpu.MemorySpace.VMEM),
        scratch_shapes=[pltpu.VMEM((S, 3 * H), jnp.float32)],
    )(x, h0, prepped["wih_t"], prepped["whh_t"], prepped["bih"], prepped["bhh"])

    # TODO(synk): for batches of independent sequences, add a leading "parallel" grid
    # axis over batch so v7x's second TensorCore is not idle.
    return out.reshape(S, 1, H), out[-1:].reshape(1, 1, H)


def encoder_forward_ref(tokens, hidden, params):
    """Pure-JAX reference of the same GRU (for correctness checks)."""
    emb = params["embedding"]
    w_ih, w_hh = params["w_ih"], params["w_hh"]
    b_ih, b_hh = params["b_ih"], params["b_hh"]
    _, H = emb.shape
    tokens = jnp.asarray(tokens, jnp.int32).reshape(-1)
    h = hidden.reshape(1, H)
    outs = []
    for t in range(tokens.shape[0]):
        xt = emb[tokens[t]].reshape(1, H)
        gi = xt @ w_ih.T + b_ih
        gh = h @ w_hh.T + b_hh
        r = jax.nn.sigmoid(gi[:, :H] + gh[:, :H])
        z = jax.nn.sigmoid(gi[:, H:2 * H] + gh[:, H:2 * H])
        n = jnp.tanh(gi[:, 2 * H:] + r * gh[:, 2 * H:])
        h = (1.0 - z) * n + z * h
        outs.append(h)
    out = jnp.stack(outs, axis=0).reshape(-1, 1, H)
    return out, h.reshape(1, 1, H)


if __name__ == "__main__":
    # Small shapes consistent with the module: vocab (input_size) = 16, hidden = 32.
    V, H = 16, 32

    key = jax.random.PRNGKey(0)
    k_emb, k_wih, k_whh, k_bih, k_bhh = jax.random.split(key, 5)
    bound = float(1.0 / jnp.sqrt(jnp.float32(H)))

    params = {
        "embedding": jax.random.normal(k_emb, (V, H), jnp.float32),
        "w_ih": jax.random.uniform(k_wih, (3 * H, H), jnp.float32, -bound, bound),
        "w_hh": jax.random.uniform(k_whh, (3 * H, H), jnp.float32, -bound, bound),
        "b_ih": jax.random.uniform(k_bih, (3 * H,), jnp.float32, -bound, bound),
        "b_hh": jax.random.uniform(k_bhh, (3 * H,), jnp.float32, -bound, bound),
    }
    prepped = prepare_encoder_params(params)           # one-time prep, reused across calls

    hidden = jnp.zeros((1, 1, H), dtype=jnp.float32)   # Encoder.init_hidden()

    # 1) Single-token step: exact Encoder.forward semantics.
    token = jnp.array(3, dtype=jnp.int32)
    out1, h1 = encoder_forward(token, hidden, prepped)
    jax.block_until_ready((out1, h1))
    out1_ref, h1_ref = encoder_forward_ref(token, hidden, params)
    assert out1.shape == (1, 1, H) and h1.shape == (1, 1, H)
    assert jnp.allclose(out1, out1_ref, atol=1e-5), "single-step output mismatch"
    assert jnp.allclose(h1, h1_ref, atol=1e-5), "single-step hidden mismatch"

    # 2) An 8-token sequence processed in ONE pallas_call / ONE kernel invocation
    #    (batched input projection + unrolled in-kernel recurrence).
    tokens = jax.random.randint(jax.random.PRNGKey(1), (8,), 0, V, dtype=jnp.int32)
    out8, h8 = encoder_forward(tokens, hidden, prepped)
    jax.block_until_ready((out8, h8))
    out8_ref, h8_ref = encoder_forward_ref(tokens, hidden, params)
    assert out8.shape == (8, 1, H) and h8.shape == (1, 1, H)
    assert jnp.allclose(out8, out8_ref, atol=1e-5), "sequence output mismatch"
    assert jnp.allclose(h8, h8_ref, atol=1e-5), "sequence hidden mismatch"

    print("KERNEL_OK")
</pallas_src>

<mosaic_0001>
module attributes {stable_mosaic.version = 11 : i64} {
  func.func @gru_encoder_kernel(%arg0: memref<1x32xf32, #tpu.memory_space<vmem>>, %arg1: memref<1x32xf32, #tpu.memory_space<vmem>>, %arg2: memref<32x96xf32, #tpu.memory_space<vmem>>, %arg3: memref<32x96xf32, #tpu.memory_space<vmem>>, %arg4: memref<1x96xf32, #tpu.memory_space<vmem>>, %arg5: memref<1x96xf32, #tpu.memory_space<vmem>>, %arg6: memref<1x32xf32, #tpu.memory_space<vmem>>, %arg7: memref<1x96xf32, #tpu.memory_space<vmem>>) attributes {dimension_semantics = [], scalar_prefetch = 0 : i64, scratch_operands = 1 : i64, tpu.core_type = #tpu.core_type<tc>} {
    %c0 = arith.constant 0 : index
    %c0_0 = arith.constant 0 : index
    %0 = vector.load %arg0[%c0, %c0_0] : memref<1x32xf32, #tpu.memory_space<vmem>>, vector<1x32xf32>
    %c0_1 = arith.constant 0 : index
    %c0_2 = arith.constant 0 : index
    %1 = vector.load %arg2[%c0_1, %c0_2] : memref<32x96xf32, #tpu.memory_space<vmem>>, vector<32x96xf32>
    %cst = arith.constant dense<0.000000e+00> : vector<1x96xf32>
    %2 = tpu.matmul %0, %1, %cst {dimension_numbers = #tpu.dot_dimension_numbers<[1], [0], [0], [1], [0, 0, 1, 1], [], []>} : vector<1x32xf32>, vector<32x96xf32>, vector<1x96xf32> -> vector<1x96xf32>
    %c0_3 = arith.constant 0 : index
    %c0_4 = arith.constant 0 : index
    %3 = vector.load %arg4[%c0_3, %c0_4] : memref<1x96xf32, #tpu.memory_space<vmem>>, vector<1x96xf32>
    %4 = arith.addf %2, %3 : vector<1x96xf32>
    %c0_5 = arith.constant 0 : index
    %c0_6 = arith.constant 0 : index
    %5 = vector.load %arg7[%c0_5, %c0_6] : memref<1x96xf32, #tpu.memory_space<vmem>>, vector<1x96xf32>
    tpu.vector_store %arg7[%c0_5, %c0_6], %4 {strides = array<i32>} : memref<1x96xf32, #tpu.memory_space<vmem>>, vector<1x96xf32>,
    %c0_7 = arith.constant 0 : index
    %c0_8 = arith.constant 0 : index
    %6 = vector.load %arg3[%c0_7, %c0_8] : memref<32x96xf32, #tpu.memory_space<vmem>>, vector<32x96xf32>
    %c0_9 = arith.constant 0 : index
    %c0_10 = arith.constant 0 : index
    %7 = vector.load %arg5[%c0_9, %c0_10] : memref<1x96xf32, #tpu.memory_space<vmem>>, vector<1x96xf32>
    %c0_11 = arith.constant 0 : index
    %c0_12 = arith.constant 0 : index
    %8 = vector.load %arg1[%c0_11, %c0_12] : memref<1x32xf32, #tpu.memory_space<vmem>>, vector<1x32xf32>
    %c0_i32 = arith.constant 0 : i32
    %9 = arith.index_cast %c0_i32 : i32 to index
    %c0_13 = arith.constant 0 : index
    %10 = vector.load %arg7[%9, %c0_13] : memref<1x96xf32, #tpu.memory_space<vmem>>, vector<1x96xf32>
    %cst_14 = arith.constant dense<0.000000e+00> : vector<1x96xf32>
    %11 = tpu.matmul %8, %6, %cst_14 {dimension_numbers = #tpu.dot_dimension_numbers<[1], [0], [0], [1], [0, 0, 1, 1], [], []>} : vector<1x32xf32>, vector<32x96xf32>, vector<1x96xf32> -> vector<1x96xf32>
    %12 = arith.addf %11, %7 : vector<1x96xf32>
    %13 = vector.extract_strided_slice %10 {offsets = [0, 0], sizes = [1, 64], strides = [1, 1]} : vector<1x96xf32> to vector<1x64xf32>
    %14 = vector.extract_strided_slice %12 {offsets = [0, 0], sizes = [1, 64], strides = [1, 1]} : vector<1x96xf32> to vector<1x64xf32>
    %15 = arith.addf %13, %14 : vector<1x64xf32>
    %16 = arith.negf %15 : vector<1x64xf32>
    %17 = math.exp %16 : vector<1x64xf32>
    %cst_15 = arith.constant 1.000000e+00 : f32
    %18 = vector.broadcast %cst_15 : f32 to vector<1x64xf32>
    %19 = arith.addf %18, %17 : vector<1x64xf32>
    %20 = arith.divf %18, %19 : vector<1x64xf32>
    %21 = vector.extract_strided_slice %20 {offsets = [0, 0], sizes = [1, 32], strides = [1, 1]} : vector<1x64xf32> to vector<1x32xf32>
    %22 = vector.extract_strided_slice %20 {offsets = [0, 32], sizes = [1, 32], strides = [1, 1]} : vector<1x64xf32> to vector<1x32xf32>
    %23 = vector.extract_strided_slice %10 {offsets = [0, 64], sizes = [1, 32], strides = [1, 1]} : vector<1x96xf32> to vector<1x32xf32>
    %24 = vector.extract_strided_slice %12 {offsets = [0, 64], sizes = [1, 32], strides = [1, 1]} : vector<1x96xf32> to vector<1x32xf32>
    %25 = arith.mulf %21, %24 : vector<1x32xf32>
    %26 = arith.addf %23, %25 : vector<1x32xf32>
    %27 = math.tanh %26 : vector<1x32xf32>
    %cst_16 = arith.constant 1.000000e+00 : f32
    %28 = vector.broadcast %cst_16 : f32 to vector<1x32xf32>
    %29 = arith.subf %28, %22 : vector<1x32xf32>
    %30 = arith.mulf %29, %27 : vector<1x32xf32>
    %31 = arith.mulf %22, %8 : vector<1x32xf32>
    %32 = arith.addf %30, %31 : vector<1x32xf32>
    %33 = arith.index_cast %c0_i32 : i32 to index
    %c0_17 = arith.constant 0 : index
    %34 = vector.load %arg6[%33, %c0_17] : memref<1x32xf32, #tpu.memory_space<vmem>>, vector<1x32xf32>
    tpu.vector_store %arg6[%33, %c0_17], %32 {strides = array<i32>} : memref<1x32xf32, #tpu.memory_space<vmem>>, vector<1x32xf32>,
    %c1_i32 = arith.constant 1 : i32
    return
  }
}

</mosaic_0001>

<llo_original>
// kernel: tpu_custom_call.1
$region0: #{tpu_custom_call.1}
  #allocation0 [shape = 'u32[]', space=smem, size = 0x4, offset = 0x4, fixed_abs, tag = 'smem constant byte address 0x4 - core index']
  #allocation1 [shape = 'u32[72,128]{1,0:T(1,128)}', space=vmem, size = 0x9000, scoped, tag = 'internal scratch']
  #allocation2 [shape = 'f32[1,96]{1,0:T(1,128)}', space=vmem, size = 0x200, scoped, tag = 'scratch operand']
  %s0 = inlined_call_operand.hbm [shape: f32[1,32], index: 0, kind: input, shape index: {}]
  %s1 = inlined_call_operand.hbm [shape: f32[1,32], index: 1, kind: input, shape index: {}]
  %s2 = inlined_call_operand.hbm [shape: f32[32,96], index: 2, kind: input, shape index: {}]
  %s3 = inlined_call_operand.hbm [shape: f32[32,96], index: 3, kind: input, shape index: {}]
  %s4 = inlined_call_operand.vmem [shape: f32[1,96], index: 4, kind: input, shape index: {}]
  %s5 = inlined_call_operand.vmem [shape: f32[1,96], index: 5, kind: input, shape index: {}]
  %s6 = inlined_call_operand.hbm [shape: f32[1,32], index: 6, kind: output, shape index: {}]
  %s7 = sld [smem:[#allocation0]]
  $region50: #{tpu_custom_call.1} parent=0
    _
  %s9 = ssub.s32 1, %s7
  %s10 = scalar_select 0, %s9, %s7
  $region1: #{tpu_custom_call.1} parent=0
    #allocation3 [shape = 'u8[512]{0}', space=vmem, size = 0x400, scoped, tag = 'input window, operand 0, single buffered']
    #allocation4 [shape = 's32[1]{0}', space=sflag, size = 0x4, scoped, tag = 'scoped memory for tpu_custom_call.1']
    #allocation5 [shape = 's32[1]{0}', space=sflag, size = 0x4, scoped, tag = 'scoped memory for tpu_custom_call.1']
    #allocation6 [shape = 'u8[512]{0}', space=vmem, size = 0x400, scoped, tag = 'input window, operand 1, single buffered']
    #allocation7 [shape = 's32[1]{0}', space=sflag, size = 0x4, scoped, tag = 'scoped memory for tpu_custom_call.1']
    #allocation8 [shape = 'u8[16384]{0}', space=vmem, size = 0x4000, scoped, tag = 'input window, operand 2, single buffered']
    #allocation9 [shape = 'u8[16384]{0}', space=vmem, size = 0x4000, scoped, tag = 'input window, operand 3, single buffered']
    #allocation10 [shape = 's32[1]{0}', space=sflag, size = 0x4, scoped, tag = 'scoped memory for tpu_custom_call.1']
    #allocation11 [shape = 'u8[512]{0}', space=vmem, size = 0x400, scoped, tag = 'output window, operand 0, single buffered']
    %11 = vsyncpa [#allocation4], 0
    %12 = vsyncpa [#allocation7], 0
    %13 = vsyncpa [#allocation10], 0
    %14 = vsyncpa [#allocation5], 0
    // Predicated region
    $region2: #{tpu_custom_call.1} parent=1 // pred_check
      _
    $region3: #{tpu_custom_call.1} parent=1 // pred_check_branch
      %16 = sbr.rel (0) target = $region5
    $region4: #{tpu_custom_call.1} parent=1 // pred_region
      %18 = vsyncadd [#allocation4], 0
      %s20 = sshll.u32 %s0, 4
      %s21 = int_to_ptr.hbm [resolvable:$true] %s20
      %s22 = sshll.u32 [#allocation3], 4
      %s23 = int_to_ptr.vmem [resolvable:$true] %s22
      %25 = dma.hbm_to_vmem [thread:$0]  %s21, 16, %s23, [#allocation4]
    $region5: #{tpu_custom_call.1} parent=1 // pred_fallthru
      _
    // Predicated region
    $region6: #{tpu_custom_call.1} parent=1 // pred_check
      _
    $region7: #{tpu_custom_call.1} parent=1 // pred_check_branch
      %27 = sbr.rel (0) target = $region9
    $region8: #{tpu_custom_call.1} parent=1 // pred_region
      %29 = vsyncadd [#allocation7], 0
      %s31 = sshll.u32 %s1, 4
      %s32 = int_to_ptr.hbm [resolvable:$true] %s31
      %s33 = sshll.u32 [#allocation6], 4
      %s34 = int_to_ptr.vmem [resolvable:$true] %s33
      %36 = dma.hbm_to_vmem [thread:$0]  %s32, 16, %s34, [#allocation7]
    $region9: #{tpu_custom_call.1} parent=1 // pred_fallthru
      _
    // Predicated region
    $region10: #{tpu_custom_call.1} parent=1 // pred_check
      _
    $region11: #{tpu_custom_call.1} parent=1 // pred_check_branch
      %38 = sbr.rel (0) target = $region13
    $region12: #{tpu_custom_call.1} parent=1 // pred_region
      %40 = vsyncadd [#allocation7], 0
      %s41 = sshll.u32 %s2, 4
      %s42 = int_to_ptr.hbm [resolvable:$true] %s41
      %s43 = sshll.u32 [#allocation8], 4
      %s44 = int_to_ptr.vmem [resolvable:$true] %s43
      %49 = dma.hbm_to_vmem [thread:$0]  %s42, 512, %s44, [#allocation7], 128, 128, 8
    $region13: #{tpu_custom_call.1} parent=1 // pred_fallthru
      _
    // Predicated region
    $region14: #{tpu_custom_call.1} parent=1 // pred_check
      _
    $region15: #{tpu_custom_call.1} parent=1 // pred_check_branch
      %51 = sbr.rel (0) target = $region17
    $region16: #{tpu_custom_call.1} parent=1 // pred_region
      %53 = vsyncadd [#allocation10], 0
      %s54 = sshll.u32 %s3, 4
      %s55 = int_to_ptr.hbm [resolvable:$true] %s54
      %s56 = sshll.u32 [#allocation9], 4
      %s57 = int_to_ptr.vmem [resolvable:$true] %s56
      %62 = dma.hbm_to_vmem [thread:$0]  %s55, 512, %s57, [#allocation10], 128, 128, 8
    $region17: #{tpu_custom_call.1} parent=1 // pred_fallthru
      _
    // Predicated region
    $region18: #{tpu_custom_call.1} parent=1 // pred_check
      _
    $region19: #{tpu_custom_call.1} parent=1 // pred_check_branch
      %64 = sbr.rel (0) target = $region21
    $region20: #{tpu_custom_call.1} parent=1 // pred_region
      _
    $region21: #{tpu_custom_call.1} parent=1 // pred_fallthru
      _
    // Predicated region
    $region22: #{tpu_custom_call.1} parent=1 // pred_check
      _
    $region23: #{tpu_custom_call.1} parent=1 // pred_check_branch
      %66 = sbr.rel (0) target = $region25
    $region24: #{tpu_custom_call.1} parent=1 // pred_region
      _
    $region25: #{tpu_custom_call.1} parent=1 // pred_fallthru
      _
    // Predicated region
    $region26: #{tpu_custom_call.1} parent=1 // pred_check
      _
    $region27: #{tpu_custom_call.1} parent=1 // pred_check_branch
      %68 = sbr.rel (0) target = $region29
    $region28: #{tpu_custom_call.1} parent=1 // pred_region
      %70 = dma.done [#allocation4], 16
    $region29: #{tpu_custom_call.1} parent=1 // pred_fallthru
      _
    // Predicated region
    $region30: #{tpu_custom_call.1} parent=1 // pred_check
      _
    $region31: #{tpu_custom_call.1} parent=1 // pred_check_branch
      %72 = sbr.rel (0) target = $region33
    $region32: #{tpu_custom_call.1} parent=1 // pred_region
      %74 = dma.done [#allocation7], 16
    $region33: #{tpu_custom_call.1} parent=1 // pred_fallthru
      _
    // Predicated region
    $region34: #{tpu_custom_call.1} parent=1 // pred_check
      _
    $region35: #{tpu_custom_call.1} parent=1 // pred_check_branch
      %76 = sbr.rel (0) target = $region37
    $region36: #{tpu_custom_call.1} parent=1 // pred_region
      %78 = dma.done [#allocation7], 512
    $region37: #{tpu_custom_call.1} parent=1 // pred_fallthru
      _
    // Predicated region
    $region38: #{tpu_custom_call.1} parent=1 // pred_check
      _
    $region39: #{tpu_custom_call.1} parent=1 // pred_check_branch
      %80 = sbr.rel (0) target = $region41
    $region40: #{tpu_custom_call.1} parent=1 // pred_region
      %82 = dma.done [#allocation10], 512
    $region41: #{tpu_custom_call.1} parent=1 // pred_fallthru
      _
    %v83 = vld [vmem:[#allocation3] sm:$0x1]
    %v84 = vld [vmem:[#allocation8] sm:$0xff]
    %v85 = vld [vmem:[#allocation8 + $0x8] sm:$0xff]
    %v86 = vld [vmem:[#allocation8 + $0x10] sm:$0xff]
    %v87 = vld [vmem:[#allocation8 + $0x18] sm:$0xff]
    %v88 = vld [vmem:[%s4] sm:$0x1]
    %vm89 = vcmask 261120
    %v91 = vsel %vm89, %v83, 0
    %93 = vmatpush.msra.mxu0 0.0
    %94 = vmatpush.msra.mxu0 0.0
    %95 = vmatpush.msra.mxu0 0.0
    %96 = vmatpush.msra.mxu0 0.0
    %97 = vmatpush.msra.mxu0 0.0
    %98 = vmatpush.msra.mxu0 0.0
    %99 = vmatpush.msra.mxu0 0.0
    %100 = vmatpush.msra.mxu0 0.0
    %101 = vmatpush.msra.mxu0 0.0
    %102 = vmatpush.msra.mxu0 0.0
    %103 = vmatpush.msra.mxu0 0.0
    %104 = vmatpush.msra.mxu0 0.0
    %105 = vmatpush.msra.mxu0 %v87
    %106 = vmatpush.msra.mxu0 %v86
    %107 = vmatpush.msra.mxu0 %v85
    %108 = vmatpush.msra.mxu0 %v84
    %109 = vmatmul.f32.gmra.mxu0 %v91
    %v110 = vpop.f32.mrf.mxu0
    %v111 = vadd.f32 %v88, %v110
    %112 = vdwg.mxu0
    %vm113 = vcmask 778240
    %114 = vst.msk [vmem:[#allocation2] sm:$0x1] %vm113, %v111
    %v115 = vld [vmem:[#allocation9] sm:$0xff]
    %v116 = vld [vmem:[#allocation9 + $0x8] sm:$0xff]
    %v117 = vld [vmem:[#allocation9 + $0x10] sm:$0xff]
    %v118 = vld [vmem:[#allocation9 + $0x18] sm:$0xff]
    %v119 = vld [vmem:[%s5] sm:$0x1]
    %v120 = vld [vmem:[#allocation6] sm:$0x1]
    %v121 = vld [vmem:[#allocation2] sm:$0x1]
    %v123 = vsel %vm89, %v120, 0
    %125 = vmatpush.msra.mxu0 0.0
    %126 = vmatpush.msra.mxu0 0.0
    %127 = vmatpush.msra.mxu0 0.0
    %128 = vmatpush.msra.mxu0 0.0
    %129 = vmatpush.msra.mxu0 0.0
    %130 = vmatpush.msra.mxu0 0.0
    %131 = vmatpush.msra.mxu0 0.0
    %132 = vmatpush.msra.mxu0 0.0
    %133 = vmatpush.msra.mxu0 0.0
    %134 = vmatpush.msra.mxu0 0.0
    %135 = vmatpush.msra.mxu0 0.0
    %136 = vmatpush.msra.mxu0 0.0
    %137 = vmatpush.msra.mxu0 %v118
    %138 = vmatpush.msra.mxu0 %v117
    %139 = vmatpush.msra.mxu0 %v116
    %140 = vmatpush.msra.mxu0 %v115
    %141 = vmatmul.f32.gmra.mxu0 %v123
    %v142 = vpop.f32.mrf.mxu0
    %v143 = vadd.f32 %v119, %v142
    %144 = vdwg.mxu0
    %v145 = vadd.f32 %v121, %v143
    %v146 = vxor.u32 %v145, 2147483648
    %v147 = vmul.f32 %v146, 1.442695
    %v148 = vpow.pop %v147
    %v149 = vadd.f32 %v148, 1.0
    %v150 = vrcp.pop %v149
    %v151 = vmul.f32 %v149, %v150
    %v152 = vsub.f32 1.0, %v151
    %v153 = vmul.f32 %v150, %v152
    %v154 = vadd.f32 %v150, %v153
    %vm155 = vweird.f32 %v149
    %vm156 = vweird.f32 %v150
    %vm157 = vmor %vm155, %vm156
    %v158 = vsel %vm157, %v150, %v154
    %v159 = vand.u32 2147483647, %v149
    %vm160 = vcmp.eq.f32.partialorder %v159, 8.507059e+37
    %v161 = vand.u32 %v149, 2147483648
    %v162 = vor.u32 1.1754944e-38, %v161
    %v163 = vsel %vm160, %v162, %v158
    %v164 = vmul.f32 1.0, %v163
    %166 = vrot.lane.b32.xlu0 %v143, 64
    %v167 = vpop.permute.xlu0 %166
    %v169 = vmul.f32 %v164, %v167
    %171 = vrot.lane.b32.xlu0 %v169, 64
    %v172 = vpop.permute.xlu0 %171
    %v174 = vadd.f32 %v121, %v172
    %v175 = vtanh.pop %v174
    %v176 = vsub.f32 1.0, %v164
    %178 = vrot.lane.b32.xlu0 %v175, 96
    %v179 = vpop.permute.xlu0 %178
    %v181 = vmul.f32 %v176, %v179
    %182 = vrot.lane.b32.xlu0 %v120, 32
    %v183 = vpop.permute.xlu0 %182
    %v185 = vmul.f32 %v164, %v183
    %v186 = vadd.f32 %v181, %v185
    %v188 = vperm.slane %v186, 0
    %189 = vrot.lane.b32.xlu0 %v188, 96
    %v190 = vpop.permute.xlu0 %189
    %vm192 = vcmask 253952
    %193 = vst.msk [vmem:[#allocation11] sm:$0x1] %vm192, %v190
    // Predicated region
    $region42: #{tpu_custom_call.1} parent=1 // pred_check
      _
    $region43: #{tpu_custom_call.1} parent=1 // pred_check_branch
      %195 = sbr.rel (0) target = $region45
    $region44: #{tpu_custom_call.1} parent=1 // pred_region
      %197 = vsyncadd [#allocation5], 0
      %s199 = sshll.u32 [#allocation11], 4
      %s200 = int_to_ptr.vmem [resolvable:$true] %s199
      %s201 = sshll.u32 %s6, 4
      %s202 = int_to_ptr.hbm [resolvable:$true] %s201
      %204 = dma.vmem_to_hbm [thread:$0]  %s200, 16, %s202, [#allocation5]
    $region45: #{tpu_custom_call.1} parent=1 // pred_fallthru
      _
    // Predicated region
    $region46: #{tpu_custom_call.1} parent=1 // pred_check
      _
    $region47: #{tpu_custom_call.1} parent=1 // pred_check_branch
      %206 = sbr.rel (0) target = $region49
    $region48: #{tpu_custom_call.1} parent=1 // pred_region
      %208 = dma.done [#allocation5], 16
    $region49: #{tpu_custom_call.1} parent=1 // pred_fallthru
      _
    %209 = vsyncpa [#allocation4], 1
    %210 = vsyncpa [#allocation7], 1
    %211 = vsyncpa [#allocation10], 1
    %212 = vsyncpa [#allocation5], 1

</llo_original>
